<compile_context>
chip_gen: v5e
topology: v5e:2x2
jax: 0.10.0
libtpu: 0.0.40
codegen_flags: <defaults>
</compile_context>

<pallas_src>
import functools
import math

import jax
import jax.numpy as jnp
from jax import lax
from jax.experimental import pallas as pl
from jax.experimental.pallas import tpu as pltpu


def _conv_project_kernel(x_ref, w1_ref, wdw_ref, bdw_ref, o_ref,
                         padl_ref, padc_ref, padr_ref, *, W, use_mxu):
    """Fused 1x1 conv -> depthwise 3x3 conv on one (batch, Cout-tile) block.

    x_ref   : (1, Cin, HW)         input, spatial flattened on the lane axis
    w1_ref  : (TC, Cin)            1x1 conv weight
    wdw_ref : (TC, 9)              depthwise 3x3 taps, k = dy*3 + dx
    bdw_ref : (TC, 1)              depthwise bias
    o_ref   : (1, TC, HW)          output
    pad*_ref: (TC, HW + 2*W) f32   zero-row-padded copies of y (left-neighbor /
                                   center / right-neighbor), so every vertical
                                   tap offset is a plain offset load.
    """
    Cin = x_ref.shape[1]
    HW = x_ref.shape[2]
    TC = w1_ref.shape[0]

    # ---------------- 1x1 conv (no bias) -> y : (TC, HW) f32 ----------------
    if use_mxu:
        # Native (possibly bf16) operands straight into the MXU, f32 accumulate.
        y = jnp.dot(w1_ref[...], x_ref[0], preferred_element_type=jnp.float32)
    else:
        # Tiny Cin: unrolled broadcast MACs on the VPU, two partial accumulators
        # so the serial add chain does not throttle the 4 VALU slots.
        # TODO(synk): a stride-0 sublane-broadcast load (pl.ds(ci, TC, stride=0))
        # would move the sublane broadcast into the vld slot.
        w1 = w1_ref[...].astype(jnp.float32)

        def term(ci):
            return w1[:, ci:ci + 1] * x_ref[0, ci:ci + 1, :].astype(jnp.float32)

        acc_even = term(0)
        acc_odd = term(1) if Cin > 1 else None
        for ci in range(2, Cin, 2):
            acc_even = acc_even + term(ci)
        for ci in range(3, Cin, 2):
            acc_odd = acc_odd + term(ci)
        y = acc_even if acc_odd is None else acc_even + acc_odd

    # ------------- depthwise 3x3, padding=1, groups=Cout, + bias -------------
    # Column masks at (1, HW) only; jnp.where broadcasts over the TC sublanes.
    pos = lax.broadcasted_iota(jnp.int32, (1, HW), 1)
    col = (pos & (W - 1)) if (W & (W - 1)) == 0 else (pos % W)
    not_col0 = col != 0          # pixel has a left  (j-1) neighbour
    not_colW = col != (W - 1)    # pixel has a right (j+1) neighbour

    # Two pre-masked horizontally shifted copies (one XLU roll each), reused by
    # the three taps of their column.  Roll wrap-around only lands on columns
    # that the mask zeroes, so no row mask is ever needed.
    y_l = jnp.where(not_col0, pltpu.roll(y, shift=1, axis=1), 0.0)       # value at (i, j-1)
    y_r = jnp.where(not_colW, pltpu.roll(y, shift=HW - 1, axis=1), 0.0)  # value at (i, j+1)

    # Zero-row-padded scratch copies: [W zeros | data | W zeros].  Vertical tap
    # offsets become static offset loads instead of XLU rolls, and the zero pad
    # rows implement the top/bottom conv zero-padding for free.
    zrow = jnp.zeros((TC, W), jnp.float32)
    for ref, val in ((padl_ref, y_l), (padc_ref, y), (padr_ref, y_r)):
        ref[:, pl.ds(0, W)] = zrow
        ref[:, pl.ds(W, HW)] = val
        ref[:, pl.ds(W + HW, W)] = zrow

    wdw = wdw_ref[...].astype(jnp.float32)      # (TC, 9)
    bias = bdw_ref[...].astype(jnp.float32)     # (TC, 1)

    # Center tap + bias folded into the init; the remaining 8 taps read straight
    # from the padded buffers at static offsets dy*W (value at (i+dy-1, j+dx-1)).
    bufs = (padl_ref, padc_ref, padr_ref)       # indexed by dx
    taps = []
    for k in range(9):
        if k == 4:
            continue
        dy, dx = divmod(k, 3)
        taps.append(bufs[dx][:, pl.ds(dy * W, HW)] * wdw[:, k:k + 1])

    acc = y * wdw[:, 4:5] + bias
    # Balanced tree of partial sums keeps the VALU slots fed.
    pair = [taps[i] + taps[i + 1] for i in range(0, 8, 2)]
    acc = acc + ((pair[0] + pair[1]) + (pair[2] + pair[3]))

    o_ref[0] = acc.astype(o_ref.dtype)


def conv_project_layer(x, conv_w, dw_w, dw_b, *, interpret=False):
    """ConvProjectLayer forward (dwconv_type='dwconv', bias=True).

    x      : (N, Cin, H, W)
    conv_w : (Cout, Cin, 1, 1)   1x1 conv weight (no bias)
    dw_w   : (Cout, 1, 3, 3)     depthwise 3x3 conv weight
    dw_b   : (Cout,)             depthwise conv bias
    returns (N, Cout, H, W)
    """
    N, Cin, H, W = x.shape
    Cout = conv_w.shape[0]
    HW = H * W

    w1 = conv_w.reshape(Cout, Cin)
    wdw = dw_w.reshape(Cout, 9)
    bdw = dw_b.reshape(Cout, 1)

    # Free, contiguous reshape (no HBM round trip, unlike an NHWC transpose).
    x_flat = x.reshape(N, Cin, HW)

    itemsize = jnp.dtype(x.dtype).itemsize

    def vmem_estimate(tc):
        est = 2 * Cin * HW * itemsize            # x block, double-buffered
        est += 2 * tc * HW * itemsize            # out block, double-buffered
        est += 2 * tc * (Cin + 10) * 4           # weight/bias blocks
        est += 3 * tc * (HW + 2 * W) * 4         # padded dwconv scratch
        est += 5 * tc * HW * 4                   # live f32 temporaries
        return est

    budget = 40 * 2**20                          # safe for v5e/v6e/v7x scoped VMEM

    # Largest Cout tile (<= 128, divisor of Cout, sublane friendly) within budget.
    if Cout <= 128:
        candidates = [Cout]
    else:
        candidates = [d for d in range(128, 0, -1) if Cout % d == 0 and d % 8 == 0]
        candidates = candidates or [d for d in range(128, 0, -1) if Cout % d == 0]
    t_cout = None
    for d in candidates:
        if vmem_estimate(d) <= budget:
            t_cout = d
            break
    if t_cout is None:
        # TODO(synk): spatial H-tiling with a 1-row halo (manual DMA) is needed
        # for whole images this large (v7x has only 64 MiB VMEM).
        raise NotImplementedError(
            "whole-image blocks exceed the VMEM budget; spatial tiling needed")
    n_ct = Cout // t_cout

    use_mxu = Cin >= 16   # below ~16 input channels the MXU would be mostly idle

    kernel = functools.partial(_conv_project_kernel, W=W, use_mxu=use_mxu)

    cost = pl.CostEstimate(
        flops=2 * N * Cout * Cin * HW + 18 * N * Cout * HW,
        transcendentals=0,
        bytes_accessed=N * (Cin + Cout) * HW * itemsize
        + Cout * (Cin + 10) * jnp.dtype(w1.dtype).itemsize,
    )

    vmem_limit = int(min(max(2 * vmem_estimate(t_cout), 16 * 2**20), 60 * 2**20))

    out_flat = pl.pallas_call(
        kernel,
        out_shape=jax.ShapeDtypeStruct((N, Cout, HW), x.dtype),
        grid_spec=pltpu.PrefetchScalarGridSpec(
            num_scalar_prefetch=0,
            grid=(N, n_ct),
            in_specs=[
                pl.BlockSpec((1, Cin, HW), lambda n, j: (n, 0, 0)),
                pl.BlockSpec((t_cout, Cin), lambda n, j: (j, 0)),
                pl.BlockSpec((t_cout, 9), lambda n, j: (j, 0)),
                pl.BlockSpec((t_cout, 1), lambda n, j: (j, 0)),
            ],
            out_specs=pl.BlockSpec((1, t_cout, HW), lambda n, j: (n, j, 0)),
            scratch_shapes=[
                pltpu.VMEM((t_cout, HW + 2 * W), jnp.float32),   # padl
                pltpu.VMEM((t_cout, HW + 2 * W), jnp.float32),   # padc
                pltpu.VMEM((t_cout, HW + 2 * W), jnp.float32),   # padr
            ],
        ),
        compiler_params=pltpu.CompilerParams(
            dimension_semantics=("parallel", "parallel"),
            vmem_limit_bytes=vmem_limit,
        ),
        cost_estimate=cost,
        interpret=interpret,
    )(x_flat, w1, wdw, bdw)

    return out_flat.reshape(N, Cout, H, W)


def _reference(x, conv_w, dw_w, dw_b):
    """Plain-JAX reference matching the PyTorch module semantics."""
    Cout = conv_w.shape[0]
    y = lax.conv_general_dilated(
        x, conv_w, window_strides=(1, 1), padding="VALID",
        dimension_numbers=("NCHW", "OIHW", "NCHW"),
        precision=lax.Precision.HIGHEST)
    z = lax.conv_general_dilated(
        y, dw_w, window_strides=(1, 1), padding=((1, 1), (1, 1)),
        dimension_numbers=("NCHW", "OIHW", "NCHW"),
        feature_group_count=Cout, precision=lax.Precision.HIGHEST)
    return z + dw_b.reshape(1, Cout, 1, 1)


if __name__ == "__main__":
    N, Cin, Cout, H, W = 2, 4, 8, 16, 16

    key = jax.random.PRNGKey(0)
    kx, k1, k2, k3 = jax.random.split(key, 4)

    x = jax.random.normal(kx, (N, Cin, H, W), dtype=jnp.float32)
    conv_w = jax.random.normal(k1, (Cout, Cin, 1, 1), dtype=jnp.float32) / math.sqrt(Cin)
    dw_w = jax.random.normal(k2, (Cout, 1, 3, 3), dtype=jnp.float32) / 3.0
    dw_b = jax.random.normal(k3, (Cout,), dtype=jnp.float32) * 0.1

    out = conv_project_layer(x, conv_w, dw_w, dw_b)
    out = jax.block_until_ready(out)

    ref = _reference(x, conv_w, dw_w, dw_b)
    assert out.shape == (N, Cout, H, W)
    max_err = float(jnp.max(jnp.abs(out - ref)))
    assert max_err < 1e-4, f"max abs error {max_err}"

    print("KERNEL_OK")
</pallas_src>

<mosaic_0001>
module attributes {stable_mosaic.version = 11 : i64} {
  func.func @_conv_project_kernel(%arg0: i32, %arg1: i32, %arg2: memref<1x4x256xf32, #tpu.memory_space<vmem>>, %arg3: memref<8x4xf32, #tpu.memory_space<vmem>>, %arg4: memref<8x9xf32, #tpu.memory_space<vmem>>, %arg5: memref<8x1xf32, #tpu.memory_space<vmem>>, %arg6: memref<1x8x256xf32, #tpu.memory_space<vmem>>, %arg7: memref<8x288xf32, #tpu.memory_space<vmem>>, %arg8: memref<8x288xf32, #tpu.memory_space<vmem>>, %arg9: memref<8x288xf32, #tpu.memory_space<vmem>>) attributes {dimension_semantics = [#tpu.dimension_semantics<parallel>, #tpu.dimension_semantics<parallel>], iteration_bounds = array<i64: 2, 1>, scalar_prefetch = 0 : i64, scratch_operands = 3 : i64, tpu.core_type = #tpu.core_type<tc>, window_params = [{transform_indices = @transform_0, window_bounds = array<i64: 1, 4, 256>}, {transform_indices = @transform_1, window_bounds = array<i64: 8, 4>}, {transform_indices = @transform_2, window_bounds = array<i64: 8, 9>}, {transform_indices = @transform_3, window_bounds = array<i64: 8, 1>}, {transform_indices = @transform_4, window_bounds = array<i64: 1, 8, 256>}]} {
    %c0 = arith.constant 0 : index
    %c0_0 = arith.constant 0 : index
    %0 = vector.load %arg3[%c0, %c0_0] : memref<8x4xf32, #tpu.memory_space<vmem>>, vector<8x4xf32>
    %1 = vector.extract_strided_slice %0 {offsets = [0, 0], sizes = [8, 1], strides = [1, 1]} : vector<8x4xf32> to vector<8x1xf32>
    %c0_1 = arith.constant 0 : index
    %c0_2 = arith.constant 0 : index
    %c0_3 = arith.constant 0 : index
    %2 = vector.load %arg2[%c0_1, %c0_2, %c0_3] : memref<1x4x256xf32, #tpu.memory_space<vmem>>, vector<1x1x256xf32>
    %3 = vector.shape_cast %2 : vector<1x1x256xf32> to vector<1x256xf32>
    %4 = vector.broadcast %1 : vector<8x1xf32> to vector<8x256xf32>
    %5 = vector.broadcast %3 : vector<1x256xf32> to vector<8x256xf32>
    %6 = arith.mulf %4, %5 : vector<8x256xf32>
    %7 = vector.extract_strided_slice %0 {offsets = [0, 1], sizes = [8, 1], strides = [1, 1]} : vector<8x4xf32> to vector<8x1xf32>
    %c0_4 = arith.constant 0 : index
    %c1 = arith.constant 1 : index
    %c0_5 = arith.constant 0 : index
    %8 = vector.load %arg2[%c0_4, %c1, %c0_5] : memref<1x4x256xf32, #tpu.memory_space<vmem>>, vector<1x1x256xf32>
    %9 = vector.shape_cast %8 : vector<1x1x256xf32> to vector<1x256xf32>
    %10 = vector.broadcast %7 : vector<8x1xf32> to vector<8x256xf32>
    %11 = vector.broadcast %9 : vector<1x256xf32> to vector<8x256xf32>
    %12 = arith.mulf %10, %11 : vector<8x256xf32>
    %13 = vector.extract_strided_slice %0 {offsets = [0, 2], sizes = [8, 1], strides = [1, 1]} : vector<8x4xf32> to vector<8x1xf32>
    %c0_6 = arith.constant 0 : index
    %c2 = arith.constant 2 : index
    %c0_7 = arith.constant 0 : index
    %14 = vector.load %arg2[%c0_6, %c2, %c0_7] : memref<1x4x256xf32, #tpu.memory_space<vmem>>, vector<1x1x256xf32>
    %15 = vector.shape_cast %14 : vector<1x1x256xf32> to vector<1x256xf32>
    %16 = vector.broadcast %13 : vector<8x1xf32> to vector<8x256xf32>
    %17 = vector.broadcast %15 : vector<1x256xf32> to vector<8x256xf32>
    %18 = arith.mulf %16, %17 : vector<8x256xf32>
    %19 = arith.addf %6, %18 : vector<8x256xf32>
    %20 = vector.extract_strided_slice %0 {offsets = [0, 3], sizes = [8, 1], strides = [1, 1]} : vector<8x4xf32> to vector<8x1xf32>
    %c0_8 = arith.constant 0 : index
    %c3 = arith.constant 3 : index
    %c0_9 = arith.constant 0 : index
    %21 = vector.load %arg2[%c0_8, %c3, %c0_9] : memref<1x4x256xf32, #tpu.memory_space<vmem>>, vector<1x1x256xf32>
    %22 = vector.shape_cast %21 : vector<1x1x256xf32> to vector<1x256xf32>
    %23 = vector.broadcast %20 : vector<8x1xf32> to vector<8x256xf32>
    %24 = vector.broadcast %22 : vector<1x256xf32> to vector<8x256xf32>
    %25 = arith.mulf %23, %24 : vector<8x256xf32>
    %26 = arith.addf %12, %25 : vector<8x256xf32>
    %27 = arith.addf %19, %26 : vector<8x256xf32>
    %28 = tpu.iota {dimensions = array<i32: 1>} : vector<1x256xi32>
    %c15_i32 = arith.constant 15 : i32
    %29 = vector.broadcast %c15_i32 : i32 to vector<1x256xi32>
    %30 = arith.andi %28, %29 : vector<1x256xi32>
    %c0_i32 = arith.constant 0 : i32
    %31 = vector.broadcast %c0_i32 : i32 to vector<1x256xi32>
    %32 = arith.cmpi ne, %30, %31 : vector<1x256xi32>
    %c15_i32_10 = arith.constant 15 : i32
    %33 = vector.broadcast %c15_i32_10 : i32 to vector<1x256xi32>
    %34 = arith.cmpi ne, %30, %33 : vector<1x256xi32>
    %c1_i32 = arith.constant 1 : i32
    %35 = tpu.dynamic_rotate %27 by %c1_i32 dim 1 : vector<8x256xf32>, i32 -> vector<8x256xf32>
    %cst = arith.constant 0.000000e+00 : f32
    %36 = vector.shape_cast %32 : vector<1x256xi1> to vector<1x256xi1>
    %37 = vector.broadcast %36 : vector<1x256xi1> to vector<8x256xi1>
    %38 = vector.broadcast %cst : f32 to vector<8x256xf32>
    %39 = arith.select %37, %35, %38 : vector<8x256xi1>, vector<8x256xf32>
    %c255_i32 = arith.constant 255 : i32
    %40 = tpu.dynamic_rotate %27 by %c255_i32 dim 1 : vector<8x256xf32>, i32 -> vector<8x256xf32>
    %cst_11 = arith.constant 0.000000e+00 : f32
    %41 = vector.shape_cast %34 : vector<1x256xi1> to vector<1x256xi1>
    %42 = vector.broadcast %41 : vector<1x256xi1> to vector<8x256xi1>
    %43 = vector.broadcast %cst_11 : f32 to vector<8x256xf32>
    %44 = arith.select %42, %40, %43 : vector<8x256xi1>, vector<8x256xf32>
    %cst_12 = arith.constant 0.000000e+00 : f32
    %45 = vector.broadcast %cst_12 : f32 to vector<8x16xf32>
    %c0_13 = arith.constant 0 : index
    %c0_14 = arith.constant 0 : index
    %46 = vector.load %arg7[%c0_13, %c0_14] : memref<8x288xf32, #tpu.memory_space<vmem>>, vector<8x16xf32>
    tpu.vector_store %arg7[%c0_13, %c0_14], %45 {strides = array<i32>} : memref<8x288xf32, #tpu.memory_space<vmem>>, vector<8x16xf32>,
    %c0_15 = arith.constant 0 : index
    %c16 = arith.constant 16 : index
    %47 = vector.load %arg7[%c0_15, %c16] : memref<8x288xf32, #tpu.memory_space<vmem>>, vector<8x256xf32>
    tpu.vector_store %arg7[%c0_15, %c16], %39 {strides = array<i32>} : memref<8x288xf32, #tpu.memory_space<vmem>>, vector<8x256xf32>,
    %c0_16 = arith.constant 0 : index
    %c272 = arith.constant 272 : index
    %48 = vector.load %arg7[%c0_16, %c272] : memref<8x288xf32, #tpu.memory_space<vmem>>, vector<8x16xf32>
    tpu.vector_store %arg7[%c0_16, %c272], %45 {strides = array<i32>} : memref<8x288xf32, #tpu.memory_space<vmem>>, vector<8x16xf32>,
    %c0_17 = arith.constant 0 : index
    %c0_18 = arith.constant 0 : index
    %49 = vector.load %arg8[%c0_17, %c0_18] : memref<8x288xf32, #tpu.memory_space<vmem>>, vector<8x16xf32>
    tpu.vector_store %arg8[%c0_17, %c0_18], %45 {strides = array<i32>} : memref<8x288xf32, #tpu.memory_space<vmem>>, vector<8x16xf32>,
    %c0_19 = arith.constant 0 : index
    %c16_20 = arith.constant 16 : index
    %50 = vector.load %arg8[%c0_19, %c16_20] : memref<8x288xf32, #tpu.memory_space<vmem>>, vector<8x256xf32>
    tpu.vector_store %arg8[%c0_19, %c16_20], %27 {strides = array<i32>} : memref<8x288xf32, #tpu.memory_space<vmem>>, vector<8x256xf32>,
    %c0_21 = arith.constant 0 : index
    %c272_22 = arith.constant 272 : index
    %51 = vector.load %arg8[%c0_21, %c272_22] : memref<8x288xf32, #tpu.memory_space<vmem>>, vector<8x16xf32>
    tpu.vector_store %arg8[%c0_21, %c272_22], %45 {strides = array<i32>} : memref<8x288xf32, #tpu.memory_space<vmem>>, vector<8x16xf32>,
    %c0_23 = arith.constant 0 : index
    %c0_24 = arith.constant 0 : index
    %52 = vector.load %arg9[%c0_23, %c0_24] : memref<8x288xf32, #tpu.memory_space<vmem>>, vector<8x16xf32>
    tpu.vector_store %arg9[%c0_23, %c0_24], %45 {strides = array<i32>} : memref<8x288xf32, #tpu.memory_space<vmem>>, vector<8x16xf32>,
    %c0_25 = arith.constant 0 : index
    %c16_26 = arith.constant 16 : index
    %53 = vector.load %arg9[%c0_25, %c16_26] : memref<8x288xf32, #tpu.memory_space<vmem>>, vector<8x256xf32>
    tpu.vector_store %arg9[%c0_25, %c16_26], %44 {strides = array<i32>} : memref<8x288xf32, #tpu.memory_space<vmem>>, vector<8x256xf32>,
    %c0_27 = arith.constant 0 : index
    %c272_28 = arith.constant 272 : index
    %54 = vector.load %arg9[%c0_27, %c272_28] : memref<8x288xf32, #tpu.memory_space<vmem>>, vector<8x16xf32>
    tpu.vector_store %arg9[%c0_27, %c272_28], %45 {strides = array<i32>} : memref<8x288xf32, #tpu.memory_space<vmem>>, vector<8x16xf32>,
    %c0_29 = arith.constant 0 : index
    %c0_30 = arith.constant 0 : index
    %55 = vector.load %arg4[%c0_29, %c0_30] : memref<8x9xf32, #tpu.memory_space<vmem>>, vector<8x9xf32>
    %c0_31 = arith.constant 0 : index
    %c0_32 = arith.constant 0 : index
    %56 = vector.load %arg5[%c0_31, %c0_32] : memref<8x1xf32, #tpu.memory_space<vmem>>, vector<8x1xf32>
    %c0_33 = arith.constant 0 : index
    %c0_34 = arith.constant 0 : index
    %57 = vector.load %arg7[%c0_33, %c0_34] : memref<8x288xf32, #tpu.memory_space<vmem>>, vector<8x256xf32>
    %58 = vector.extract_strided_slice %55 {offsets = [0, 0], sizes = [8, 1], strides = [1, 1]} : vector<8x9xf32> to vector<8x1xf32>
    %59 = vector.broadcast %58 : vector<8x1xf32> to vector<8x256xf32>
    %60 = arith.mulf %57, %59 : vector<8x256xf32>
    %c0_35 = arith.constant 0 : index
    %c0_36 = arith.constant 0 : index
    %61 = vector.load %arg8[%c0_35, %c0_36] : memref<8x288xf32, #tpu.memory_space<vmem>>, vector<8x256xf32>
    %62 = vector.extract_strided_slice %55 {offsets = [0, 1], sizes = [8, 1], strides = [1, 1]} : vector<8x9xf32> to vector<8x1xf32>
    %63 = vector.broadcast %62 : vector<8x1xf32> to vector<8x256xf32>
    %64 = arith.mulf %61, %63 : vector<8x256xf32>
    %c0_37 = arith.constant 0 : index
    %c0_38 = arith.constant 0 : index
    %65 = vector.load %arg9[%c0_37, %c0_38] : memref<8x288xf32, #tpu.memory_space<vmem>>, vector<8x256xf32>
    %66 = vector.extract_strided_slice %55 {offsets = [0, 2], sizes = [8, 1], strides = [1, 1]} : vector<8x9xf32> to vector<8x1xf32>
    %67 = vector.broadcast %66 : vector<8x1xf32> to vector<8x256xf32>
    %68 = arith.mulf %65, %67 : vector<8x256xf32>
    %c0_39 = arith.constant 0 : index
    %c16_40 = arith.constant 16 : index
    %69 = vector.load %arg7[%c0_39, %c16_40] : memref<8x288xf32, #tpu.memory_space<vmem>>, vector<8x256xf32>
    %70 = vector.extract_strided_slice %55 {offsets = [0, 3], sizes = [8, 1], strides = [1, 1]} : vector<8x9xf32> to vector<8x1xf32>
    %71 = vector.broadcast %70 : vector<8x1xf32> to vector<8x256xf32>
    %72 = arith.mulf %69, %71 : vector<8x256xf32>
    %c0_41 = arith.constant 0 : index
    %c16_42 = arith.constant 16 : index
    %73 = vector.load %arg9[%c0_41, %c16_42] : memref<8x288xf32, #tpu.memory_space<vmem>>, vector<8x256xf32>
    %74 = vector.extract_strided_slice %55 {offsets = [0, 5], sizes = [8, 1], strides = [1, 1]} : vector<8x9xf32> to vector<8x1xf32>
    %75 = vector.broadcast %74 : vector<8x1xf32> to vector<8x256xf32>
    %76 = arith.mulf %73, %75 : vector<8x256xf32>
    %c0_43 = arith.constant 0 : index
    %c32 = arith.constant 32 : index
    %77 = vector.load %arg7[%c0_43, %c32] : memref<8x288xf32, #tpu.memory_space<vmem>>, vector<8x256xf32>
    %78 = vector.extract_strided_slice %55 {offsets = [0, 6], sizes = [8, 1], strides = [1, 1]} : vector<8x9xf32> to vector<8x1xf32>
    %79 = vector.broadcast %78 : vector<8x1xf32> to vector<8x256xf32>
    %80 = arith.mulf %77, %79 : vector<8x256xf32>
    %c0_44 = arith.constant 0 : index
    %c32_45 = arith.constant 32 : index
    %81 = vector.load %arg8[%c0_44, %c32_45] : memref<8x288xf32, #tpu.memory_space<vmem>>, vector<8x256xf32>
    %82 = vector.extract_strided_slice %55 {offsets = [0, 7], sizes = [8, 1], strides = [1, 1]} : vector<8x9xf32> to vector<8x1xf32>
    %83 = vector.broadcast %82 : vector<8x1xf32> to vector<8x256xf32>
    %84 = arith.mulf %81, %83 : vector<8x256xf32>
    %c0_46 = arith.constant 0 : index
    %c32_47 = arith.constant 32 : index
    %85 = vector.load %arg9[%c0_46, %c32_47] : memref<8x288xf32, #tpu.memory_space<vmem>>, vector<8x256xf32>
    %86 = vector.extract_strided_slice %55 {offsets = [0, 8], sizes = [8, 1], strides = [1, 1]} : vector<8x9xf32> to vector<8x1xf32>
    %87 = vector.broadcast %86 : vector<8x1xf32> to vector<8x256xf32>
    %88 = arith.mulf %85, %87 : vector<8x256xf32>
    %89 = vector.extract_strided_slice %55 {offsets = [0, 4], sizes = [8, 1], strides = [1, 1]} : vector<8x9xf32> to vector<8x1xf32>
    %90 = vector.broadcast %89 : vector<8x1xf32> to vector<8x256xf32>
    %91 = arith.mulf %27, %90 : vector<8x256xf32>
    %92 = vector.broadcast %56 : vector<8x1xf32> to vector<8x256xf32>
    %93 = arith.addf %91, %92 : vector<8x256xf32>
    %94 = arith.addf %60, %64 : vector<8x256xf32>
    %95 = arith.addf %68, %72 : vector<8x256xf32>
    %96 = arith.addf %76, %80 : vector<8x256xf32>
    %97 = arith.addf %84, %88 : vector<8x256xf32>
    %98 = arith.addf %94, %95 : vector<8x256xf32>
    %99 = arith.addf %96, %97 : vector<8x256xf32>
    %100 = arith.addf %98, %99 : vector<8x256xf32>
    %101 = arith.addf %93, %100 : vector<8x256xf32>
    %c0_48 = arith.constant 0 : index
    %c0_49 = arith.constant 0 : index
    %c0_50 = arith.constant 0 : index
    %102 = vector.load %arg6[%c0_48, %c0_49, %c0_50] : memref<1x8x256xf32, #tpu.memory_space<vmem>>, vector<1x8x256xf32>
    %103 = vector.shape_cast %102 : vector<1x8x256xf32> to vector<8x256xf32>
    %104 = vector.shape_cast %101 : vector<8x256xf32> to vector<1x8x256xf32>
    tpu.vector_store %arg6[%c0_48, %c0_49, %c0_50], %104 {strides = array<i32>} : memref<1x8x256xf32, #tpu.memory_space<vmem>>, vector<1x8x256xf32>,
    return
  }
  func.func @transform_0(%arg0: i32, %arg1: i32) -> (i32, i32, i32) {
    %c0_i32 = arith.constant 0 : i32
    %c0_i32_0 = arith.constant 0 : i32
    %c0_i32_1 = arith.constant 0 : i32
    return %arg0, %c0_i32, %c0_i32_0 : i32, i32, i32
  }
  func.func @transform_1(%arg0: i32, %arg1: i32) -> (i32, i32) {
    %c0_i32 = arith.constant 0 : i32
    %c0_i32_0 = arith.constant 0 : i32
    return %arg1, %c0_i32 : i32, i32
  }
  func.func @transform_2(%arg0: i32, %arg1: i32) -> (i32, i32) {
    %c0_i32 = arith.constant 0 : i32
    %c0_i32_0 = arith.constant 0 : i32
    return %arg1, %c0_i32 : i32, i32
  }
  func.func @transform_3(%arg0: i32, %arg1: i32) -> (i32, i32) {
    %c0_i32 = arith.constant 0 : i32
    %c0_i32_0 = arith.constant 0 : i32
    return %arg1, %c0_i32 : i32, i32
  }
  func.func @transform_4(%arg0: i32, %arg1: i32) -> (i32, i32, i32) {
    %c0_i32 = arith.constant 0 : i32
    %c0_i32_0 = arith.constant 0 : i32
    return %arg0, %arg1, %c0_i32 : i32, i32, i32
  }
}

</mosaic_0001>

<llo_original>
// kernel: tpu_custom_call.1
$region0: #{tpu_custom_call.1}
  #allocation0 [shape = 'u32[]', space=smem, size = 0x4, offset = 0x4, fixed_abs, tag = 'smem constant byte address 0x4 - core index']
  #allocation1 [shape = 'u32[72,128]{1,0:T(1,128)}', space=vmem, size = 0x9000, scoped, tag = 'internal scratch']
  #allocation2 [shape = 'f32[8,288]{1,0:T(8,128)}', space=vmem, size = 0x3000, scoped, tag = 'scratch operand']
  #allocation3 [shape = 'f32[8,288]{1,0:T(8,128)}', space=vmem, size = 0x3000, scoped, tag = 'scratch operand']
  #allocation4 [shape = 'f32[8,288]{1,0:T(8,128)}', space=vmem, size = 0x3000, scoped, tag = 'scratch operand']
  %s0 = inlined_call_operand.vmem [shape: f32[2,4,256], index: 0, kind: input, shape index: {}]
  %s1 = inlined_call_operand.vmem [shape: f32[8,4], index: 1, kind: input, shape index: {}]
  %s2 = inlined_call_operand.hbm [shape: f32[8,9], index: 2, kind: input, shape index: {}]
  %s3 = inlined_call_operand.vmem [shape: f32[8,1], index: 3, kind: input, shape index: {}]
  %s4 = inlined_call_operand.hbm [shape: f32[2,8,256], index: 4, kind: output, shape index: {}]
  %s5 = sld [smem:[#allocation0]]
  $region53: #{tpu_custom_call.1} parent=0
    _
  %s7 = ssub.s32 1, %s5
  %s8 = scalar_select 0, %s7, %s5
  $region1: #{tpu_custom_call.1} parent=0
    #allocation5 [shape = 'u8[4096]{0}', space=vmem, size = 0x1000, scoped, tag = 'input window, operand 2, single buffered']
    #allocation6 [shape = 's32[2]{0}', space=sflag, size = 0x8, scoped, tag = 'scoped memory for tpu_custom_call.1']
    #allocation7 [shape = 's32[2]{0}', space=sflag, size = 0x8, scoped, tag = 'scoped memory for tpu_custom_call.1']
    #allocation8 [shape = 'u8[16384]{0}', space=vmem, size = 0x4000, scoped, tag = 'output window, operand 0']
    %9 = vsyncpa [#allocation6], 0
    %10 = vsyncpa [#allocation7], 0
    %s11 = scalar_lea.sflag [#allocation7], 1
    %12 = vsyncpa %s11, 0
    loop: start=0, step=1, limit=4
    $region2: #{tpu_custom_call.1} parent=1 // loop_pre_header
      _
    $region3: #{tpu_custom_call.1} parent=1 // loop_header
      %s14 = sphi 0, %s18
      %p15 = scmp.ge.s32.totalorder %s14, 4
      %s21 = sphi 0, %s33
      %s22 = sphi 0, %s29
      %s23 = sphi 0, %s21
      %s24 = sphi 0, %s22
      %s25 = sphi 0, %s23
      %s26 = sphi 0, %s24
      %s36 = sphi 0, %s38
      %s39 = sphi 0, %s36
      %s40 = sphi 0, %s39
      %s56 = sphi 0, %s40
      %s62 = sphi 0, %s64
      %s65 = sphi 0, %s62
      %s66 = sphi 0, %s65
      %s82 = sphi 0, %s66
      %s88 = sphi 0, %s90
      %s91 = sphi 0, %s88
      %s92 = sphi 0, %s91
      %s108 = sphi 0, %s92
      %s114 = sphi 0, %s116
      %s117 = sphi 0, %s114
      %s118 = sphi 0, %s117
      %s134 = sphi 0, %s118
      %s142 = sphi 0, %s144
      %s145 = sphi 0, %s142
      %s146 = sphi 0, %s145
      %s162 = sphi 0, %s146
    $region4: #{tpu_custom_call.1} parent=1 // loop_header_branch
      %17 = sbr.rel (%p15) target = $region8
    $region5: #{tpu_custom_call.1} parent=1 // loop_body
      %s19 = ssub.s32 %s14, 1
      %s20 = ssub.s32 %s14, 2
      %s27 = sadd.s32 1, %s22
      %p28 = scmp.ge.s32.totalorder %s27, 1
      %s29 = scalar_select %p28, 0, %s27
      %s30 = sadd.s32 1, %s21
      %s31 = scalar_select %p28, %s30, %s21
      %p32 = scmp.ge.s32.totalorder %s31, 2
      %s33 = scalar_select %p32, 0, %s31
      %s34 = ssub.s32 %s21, %s33
      %p35 = scmp.eq.s32.totalorder %s34, 0
      %s37 = sadd.s32 %s36, 1
      %s38 = scalar_select %p35, %s36, %s37
      %p41 = pneg %p35
      %p42 = scmp.eq.s32.totalorder %s14, 1
      %p43 = por %p41, %p42
      %p44 = scmp.ne.s32.totalorder %s36, %s39
      %p45 = scmp.eq.s32.totalorder %s14, 0
      %p46 = por %p44, %p45
      %p47 = scmp.ne.s32.totalorder %s36, %s39
      %p48 = scmp.eq.s32.totalorder %s19, 1
      %p49 = por %p47, %p48
      %p50 = scmp.ne.s32.totalorder %s39, %s40
      %p51 = scmp.eq.s32.totalorder %s19, 0
      %p52 = por %p50, %p51
      %p53 = scmp.ne.s32.totalorder %s39, %s40
      %p54 = scmp.eq.s32.totalorder %s20, 1
      %p55 = por %p53, %p54
      %p57 = scmp.ne.s32.totalorder %s40, %s56
      %p58 = scmp.eq.s32.totalorder %s20, 0
      %p59 = por %p57, %p58
      %s60 = ssub.s32 %s22, %s29
      %p61 = scmp.eq.s32.totalorder %s60, 0
      %s63 = sadd.s32 %s62, 1
      %s64 = scalar_select %p61, %s62, %s63
      %p67 = pneg %p61
      %p68 = scmp.eq.s32.totalorder %s14, 1
      %p69 = por %p67, %p68
      %p70 = scmp.ne.s32.totalorder %s62, %s65
      %p71 = scmp.eq.s32.totalorder %s14, 0
      %p72 = por %p70, %p71
      %p73 = scmp.ne.s32.totalorder %s62, %s65
      %p74 = scmp.eq.s32.totalorder %s19, 1
      %p75 = por %p73, %p74
      %p76 = scmp.ne.s32.totalorder %s65, %s66
      %p77 = scmp.eq.s32.totalorder %s19, 0
      %p78 = por %p76, %p77
      %p79 = scmp.ne.s32.totalorder %s65, %s66
      %p80 = scmp.eq.s32.totalorder %s20, 1
      %p81 = por %p79, %p80
      %p83 = scmp.ne.s32.totalorder %s66, %s82
      %p84 = scmp.eq.s32.totalorder %s20, 0
      %p85 = por %p83, %p84
      %s86 = ssub.s32 %s22, %s29
      %p87 = scmp.eq.s32.totalorder %s86, 0
      %s89 = sadd.s32 %s88, 1
      %s90 = scalar_select %p87, %s88, %s89
      %p93 = pneg %p87
      %p94 = scmp.eq.s32.totalorder %s14, 1
      %p95 = por %p93, %p94
      %p96 = scmp.ne.s32.totalorder %s88, %s91
      %p97 = scmp.eq.s32.totalorder %s14, 0
      %p98 = por %p96, %p97
      %p99 = scmp.ne.s32.totalorder %s88, %s91
      %p100 = scmp.eq.s32.totalorder %s19, 1
      %p101 = por %p99, %p100
      %p102 = scmp.ne.s32.totalorder %s91, %s92
      %p103 = scmp.eq.s32.totalorder %s19, 0
      %p104 = por %p102, %p103
      %p105 = scmp.ne.s32.totalorder %s91, %s92
      %p106 = scmp.eq.s32.totalorder %s20, 1
      %p107 = por %p105, %p106
      %p109 = scmp.ne.s32.totalorder %s92, %s108
      %p110 = scmp.eq.s32.totalorder %s20, 0
      %p111 = por %p109, %p110
      %s112 = ssub.s32 %s22, %s29
      %p113 = scmp.eq.s32.totalorder %s112, 0
      %s115 = sadd.s32 %s114, 1
      %s116 = scalar_select %p113, %s114, %s115
      %p119 = pneg %p113
      %p120 = scmp.eq.s32.totalorder %s14, 1
      %p121 = por %p119, %p120
      %p122 = scmp.ne.s32.totalorder %s114, %s117
      %p123 = scmp.eq.s32.totalorder %s14, 0
      %p124 = por %p122, %p123
      %p125 = scmp.ne.s32.totalorder %s114, %s117
      %p126 = scmp.eq.s32.totalorder %s19, 1
      %p127 = por %p125, %p126
      %p128 = scmp.ne.s32.totalorder %s117, %s118
      %p129 = scmp.eq.s32.totalorder %s19, 0
      %p130 = por %p128, %p129
      %p131 = scmp.ne.s32.totalorder %s117, %s118
      %p132 = scmp.eq.s32.totalorder %s20, 1
      %p133 = por %p131, %p132
      %p135 = scmp.ne.s32.totalorder %s118, %s134
      %p136 = scmp.eq.s32.totalorder %s20, 0
      %p137 = por %p135, %p136
      %s138 = ssub.s32 %s21, %s33
      %s139 = ssub.s32 %s22, %s29
      %s140 = sor.u32 %s138, %s139
      %p141 = scmp.eq.s32.totalorder %s140, 0
      %s143 = sadd.s32 %s142, 1
      %s144 = scalar_select %p141, %s142, %s143
      %p147 = pneg %p141
      %p148 = scmp.eq.s32.totalorder %s14, 1
      %p149 = por %p147, %p148
      %p150 = scmp.ne.s32.totalorder %s142, %s145
      %p151 = scmp.eq.s32.totalorder %s14, 0
      %p152 = por %p150, %p151
      %p153 = scmp.ne.s32.totalorder %s142, %s145
      %p154 = scmp.eq.s32.totalorder %s19, 1
      %p155 = por %p153, %p154
      %p156 = scmp.ne.s32.totalorder %s145, %s146
      %p157 = scmp.eq.s32.totalorder %s19, 0
      %p158 = por %p156, %p157
      %p159 = scmp.ne.s32.totalorder %s145, %s146
      %p160 = scmp.eq.s32.totalorder %s20, 1
      %p161 = por %p159, %p160
      %p163 = scmp.ne.s32.totalorder %s146, %s162
      %p164 = scmp.eq.s32.totalorder %s20, 0
      %p165 = por %p163, %p164
      %p166 = scmp.le.s32.totalorder 1, %s14
      %p167 = scmp.lt.s32.totalorder %s14, 3
      %p168 = pnand %p166, %p167
      %p169 = pneg %p168
      // Predicated region
      $region9: #{tpu_custom_call.1} parent=5 // pred_check
        _
      $region10: #{tpu_custom_call.1} parent=5 // pred_check_branch
        %171 = sbr.rel (%p168) target = $region12
      $region11: #{tpu_custom_call.1} parent=5 // pred_region
        %s172 = ssub.s32 %s14, 1
        // Predicated region
        $region13: #{tpu_custom_call.1} parent=11 // pred_check
          %p173 = pneg %p78
        $region14: #{tpu_custom_call.1} parent=11 // pred_check_branch
          %175 = sbr.rel (%p173) target = $region16
        $region15: #{tpu_custom_call.1} parent=11 // pred_region
          %p176 = scmp.lt.s32.totalorder %s24, 0
          %s177 = scalar_select %p176, %s24, 0
          %s178 = smul.addr %s177, 8
          %s179 = scalar_lea.vmem %s1, %s178
        $region16: #{tpu_custom_call.1} parent=11 // pred_fallthru
          _
        // Predicated region
        $region17: #{tpu_custom_call.1} parent=11 // pred_check
          %p180 = pneg %p104
        $region18: #{tpu_custom_call.1} parent=11 // pred_check_branch
          %182 = sbr.rel (%p180) target = $region20
        $region19: #{tpu_custom_call.1} parent=11 // pred_region
          %184 = vsyncadd [#allocation6], 0
          %s185 = smul.addr %s24, 8
          %s186 = scalar_lea.hbm %s2, %s185
          %s188 = sshll.u32 %s186, 4
          %s189 = int_to_ptr.hbm [resolvable:$true] %s188
          %s190 = sshll.u32 [#allocation5], 4
          %s191 = int_to_ptr.vmem [resolvable:$true] %s190
          %193 = dma.hbm_to_vmem [thread:$0]  %s189, 128, %s191, [#allocation6]
        $region20: #{tpu_custom_call.1} parent=11 // pred_fallthru
          _
        // Predicated region
        $region21: #{tpu_custom_call.1} parent=11 // pred_check
          %p194 = pneg %p130
        $region22: #{tpu_custom_call.1} parent=11 // pred_check_branch
          %196 = sbr.rel (%p194) target = $region24
        $region23: #{tpu_custom_call.1} parent=11 // pred_region
          %p197 = scmp.lt.s32.totalorder %s24, 0
          %s198 = scalar_select %p197, %s24, 0
          %s199 = smul.addr %s198, 8
          %s200 = scalar_lea.vmem %s3, %s199
        $region24: #{tpu_custom_call.1} parent=11 // pred_fallthru
          _
      $region12: #{tpu_custom_call.1} parent=5 // pred_fallthru
        _
      %p201 = scmp.lt.s32.totalorder %s14, 2
      // Predicated region
      $region25: #{tpu_custom_call.1} parent=5 // pred_check
        %p202 = pneg %p201
      $region26: #{tpu_custom_call.1} parent=5 // pred_check_branch
        %204 = sbr.rel (%p202) target = $region28
      $region27: #{tpu_custom_call.1} parent=5 // pred_region
        // Predicated region
        $region29: #{tpu_custom_call.1} parent=27 // pred_check
          %p205 = pneg %p46
        $region30: #{tpu_custom_call.1} parent=27 // pred_check_branch
          %207 = sbr.rel (%p205) target = $region32
        $region31: #{tpu_custom_call.1} parent=27 // pred_region
          %p208 = scmp.lt.s32.totalorder %s21, 1
          %s209 = scalar_select %p208, %s21, 1
          %s210 = smul.addr %s209, 2
          %s211 = smul.addr %s210, 4
          %s212 = scalar_lea.vmem %s0, %s211
        $region32: #{tpu_custom_call.1} parent=27 // pred_fallthru
          _
      $region28: #{tpu_custom_call.1} parent=5 // pred_fallthru
        _
      %p213 = scmp.le.s32.totalorder 1, %s14
      %p214 = scmp.lt.s32.totalorder %s14, 3
      %p215 = pnand %p213, %p214
      %p216 = pneg %p215
      // Predicated region
      $region33: #{tpu_custom_call.1} parent=5 // pred_check
        _
      $region34: #{tpu_custom_call.1} parent=5 // pred_check_branch
        %218 = sbr.rel (%p215) target = $region36
      $region35: #{tpu_custom_call.1} parent=5 // pred_region
        %s219 = ssub.s32 %s14, 1
        // Predicated region
        $region37: #{tpu_custom_call.1} parent=35 // pred_check
          %p220 = pneg %p104
        $region38: #{tpu_custom_call.1} parent=35 // pred_check_branch
          %222 = sbr.rel (%p220) target = $region40
        $region39: #{tpu_custom_call.1} parent=35 // pred_region
          %224 = dma.done [#allocation6], 128
        $region40: #{tpu_custom_call.1} parent=35 // pred_fallthru
          _
        %p225 = scmp.lt.s32.totalorder %s23, 1
        %s226 = scalar_select %p225, %s23, 1
        %s227 = smul.addr %s226, 2
        %s228 = smul.addr %s227, 4
        %s229 = scalar_lea.vmem %s0, %s228
        %p230 = pneg %p52
        %p231 = pneg %p49
        %p232 = scmp.lt.s32.totalorder %s24, 0
        %s233 = scalar_select %p232, %s24, 0
        %s234 = smul.addr %s233, 8
        %s235 = scalar_lea.vmem %s1, %s234
        %p236 = pneg %p78
        %p237 = pneg %p75
        %p238 = pneg %p104
        %p239 = pneg %p101
        %p240 = scmp.lt.s32.totalorder %s24, 0
        %s241 = scalar_select %p240, %s24, 0
        %s242 = smul.addr %s241, 8
        %s243 = scalar_lea.vmem %s3, %s242
        %p244 = pneg %p130
        %p245 = pneg %p127
        %p246 = pneg %p158
        %p247 = pneg %p155
        %s248 = sand.u32 %s145, 1
        %s249 = scalar_lea.sflag [#allocation7], %s248
        %s250 = sand.u32 %s145, 1
        %s251 = smul.addr %s250, 16
        %s252 = scalar_lea.vmem [#allocation8], %s251
        %p253 = scmp.lt.s32.totalorder %s23, 1
        %s254 = scalar_select %p253, %s23, 1
        %s255 = smul.addr %s254, 2
        %s256 = smul.addr %s255, 4
        %s257 = scalar_lea.vmem %s0, %s256
        %p258 = scmp.lt.s32.totalorder %s24, 0
        %s259 = scalar_select %p258, %s24, 0
        %s260 = smul.addr %s259, 8
        %s261 = scalar_lea.vmem %s1, %s260
        %p262 = scmp.lt.s32.totalorder %s24, 0
        %s263 = scalar_select %p262, %s24, 0
        %s264 = smul.addr %s263, 8
        %s265 = scalar_lea.vmem %s3, %s264
        %v266 = vld [vmem:[%s261] sm:$0xff]
        %v267 = vld [vmem:[%s257] ss:$4 sm:$0x3]
        %269 = vset.pattern.permute.xlu0 0
        %270 = vperm.xlu0 %269, %v266
        %v271 = vpop.permute.xlu0 %270
        %v274 = vperm.slane %v267, 0
        %v275 = vperm.slane %v267, 1
        %v278 = vmul.f32 %v271, %v274
        %v279 = vmul.f32 %v271, %v275
        %s280 = scalar_lea.vmem %s257, 1
        %v281 = vld [vmem:[%s280] ss:$4 sm:$0x3]
        %282 = vset.pattern.permute.xlu0 1
        %283 = vperm.xlu0 %282, %v266
        %v284 = vpop.permute.xlu0 %283
        %v287 = vperm.slane %v281, 0
        %v288 = vperm.slane %v281, 1
        %v291 = vmul.f32 %v284, %v287
        %v292 = vmul.f32 %v284, %v288
        %s293 = scalar_lea.vmem %s257, 2
        %v294 = vld [vmem:[%s293] ss:$4 sm:$0x3]
        %295 = vset.pattern.permute.xlu0 2
        %296 = vperm.xlu0 %295, %v266
        %v297 = vpop.permute.xlu0 %296
        %v300 = vperm.slane %v294, 0
        %v301 = vperm.slane %v294, 1
        %v304 = vmul.f32 %v297, %v300
        %v305 = vmul.f32 %v297, %v301
        %v306 = vadd.f32 %v278, %v304
        %v307 = vadd.f32 %v279, %v305
        %s308 = scalar_lea.vmem %s257, 3
        %v309 = vld [vmem:[%s308] ss:$4 sm:$0x3]
        %310 = vset.pattern.permute.xlu0 3
        %311 = vperm.xlu0 %310, %v266
        %v312 = vpop.permute.xlu0 %311
        %v315 = vperm.slane %v309, 0
        %v316 = vperm.slane %v309, 1
        %v319 = vmul.f32 %v312, %v315
        %v320 = vmul.f32 %v312, %v316
        %v321 = vadd.f32 %v291, %v319
        %v322 = vadd.f32 %v292, %v320
        %v323 = vadd.f32 %v306, %v321
        %v324 = vadd.f32 %v307, %v322
        %v325 = vlaneseq
        %v326 = vand.u32 %v325, 127
        %v327 = vadd.s32 %v326, 128
        %v328 = vand.u32 %v326, 15
        %v329 = vand.u32 %v327, 15
        %vm330 = vcmp.ne.s32.totalorder %v328, 0
        %vm331 = vcmp.ne.s32.totalorder %v329, 0
        %vm332 = vcmp.ne.s32.totalorder %v328, 15
        %vm333 = vcmp.ne.s32.totalorder %v329, 15
        %334 = vrot.lane.b32.xlu0 %v323, 1
        %v335 = vpop.permute.xlu0 %334
        %336 = vrot.lane.b32.xlu0 %v324, 1
        %v337 = vpop.permute.xlu0 %336
        %vm338 = vcmp.lt.s32.totalorder %v326, 1
        %v339 = vsel %vm338, %v335, %v337
        %v340 = vsel %vm338, %v337, %v335
        %v341 = vsel %vm330, 1, 0
        %v342 = vsel %vm331, 1, 0
        %vm343 = vcmp.eq.s32.totalorder %v341, 1
        %vm344 = vcmp.eq.s32.totalorder %v342, 1
        %v345 = vsel %vm343, %v340, 0.0
        %v346 = vsel %vm344, %v339, 0.0
        %347 = vrot.lane.b32.xlu0 %v323, 127
        %v348 = vpop.permute.xlu0 %347
        %349 = vrot.lane.b32.xlu0 %v324, 127
        %v350 = vpop.permute.xlu0 %349
        %vm351 = vcmp.lt.s32.totalorder %v326, 127
        %v352 = vsel %vm351, %v348, %v350
        %v353 = vsel %vm351, %v350, %v348
        %v354 = vsel %vm332, 1, 0
        %v355 = vsel %vm333, 1, 0
        %vm356 = vcmp.eq.s32.totalorder %v354, 1
        %vm357 = vcmp.eq.s32.totalorder %v355, 1
        %v358 = vsel %vm356, %v352, 0.0
        %v359 = vsel %vm357, %v353, 0.0
        %vm360 = vcmask 130048
        %361 = vst.msk [vmem:[#allocation2] sm:$0xff] %vm360, 0.0
        %364 = vrot.lane.b32.xlu0 %v345, 16
        %v365 = vpop.permute.xlu0 %364
        %366 = vrot.lane.b32.xlu0 %v346, 16
        %v367 = vpop.permute.xlu0 %366
        %v368 = vsel %vm360, %v365, %v367
        %vm372 = vcmask 1047680
        %373 = vst.msk [vmem:[#allocation2] sm:$0xff] %vm372, %v365
        %374 = vst [vmem:[#allocation2 + $0x8] sm:$0xff] %v368
        %375 = vst.msk [vmem:[#allocation2 + $0x10] sm:$0xff] %vm360, %v367
        %vm376 = vcmask 261248
        %377 = vst.msk [vmem:[#allocation2 + $0x10] sm:$0xff] %vm376, 0.0
        %378 = vst.msk [vmem:[#allocation3] sm:$0xff] %vm360, 0.0
        %381 = vrot.lane.b32.xlu0 %v323, 16
        %v382 = vpop.permute.xlu0 %381
        %383 = vrot.lane.b32.xlu0 %v324, 16
        %v384 = vpop.permute.xlu0 %383
        %v385 = vsel %vm360, %v382, %v384
        %389 = vst.msk [vmem:[#allocation3] sm:$0xff] %vm372, %v382
        %390 = vst [vmem:[#allocation3 + $0x8] sm:$0xff] %v385
        %391 = vst.msk [vmem:[#allocation3 + $0x10] sm:$0xff] %vm360, %v384
        %392 = vst.msk [vmem:[#allocation3 + $0x10] sm:$0xff] %vm376, 0.0
        %393 = vst.msk [vmem:[#allocation4] sm:$0xff] %vm360, 0.0
        %396 = vrot.lane.b32.xlu0 %v358, 16
        %v397 = vpop.permute.xlu0 %396
        %398 = vrot.lane.b32.xlu0 %v359, 16
        %v399 = vpop.permute.xlu0 %398
        %v400 = vsel %vm360, %v397, %v399
        %404 = vst.msk [vmem:[#allocation4] sm:$0xff] %vm372, %v397
        %405 = vst [vmem:[#allocation4 + $0x8] sm:$0xff] %v400
        %406 = vst.msk [vmem:[#allocation4 + $0x10] sm:$0xff] %vm360, %v399
        %407 = vst.msk [vmem:[#allocation4 + $0x10] sm:$0xff] %vm376, 0.0
        %v408 = vld [vmem:[#allocation5] sm:$0xff]
        %v409 = vld [vmem:[%s265] sm:$0xff]
        %v410 = vld [vmem:[#allocation2] sm:$0xff]
        %v411 = vld [vmem:[#allocation2 + $0x8] sm:$0xff]
        %413 = vset.pattern.permute.xlu0 0
        %414 = vperm.xlu0 %413, %v408
        %v415 = vpop.permute.xlu0 %414
        %v417 = vmul.f32 %v410, %v415
        %v418 = vmul.f32 %v411, %v415
        %v419 = vld [vmem:[#allocation3] sm:$0xff]
        %v420 = vld [vmem:[#allocation3 + $0x8] sm:$0xff]
        %421 = vset.pattern.permute.xlu0 1
        %422 = vperm.xlu0 %421, %v408
        %v423 = vpop.permute.xlu0 %422
        %v425 = vmul.f32 %v419, %v423
        %v426 = vmul.f32 %v420, %v423
        %v427 = vld [vmem:[#allocation4] sm:$0xff]
        %v428 = vld [vmem:[#allocation4 + $0x8] sm:$0xff]
        %429 = vset.pattern.permute.xlu0 2
        %430 = vperm.xlu0 %429, %v408
        %v431 = vpop.permute.xlu0 %430
        %v433 = vmul.f32 %v427, %v431
        %v434 = vmul.f32 %v428, %v431
        %v435 = vld [vmem:[#allocation2] sm:$0xff]
        %v436 = vld [vmem:[#allocation2 + $0x8] sm:$0xff]
        %v437 = vld [vmem:[#allocation2 + $0x10] sm:$0xff]
        %438 = vset.pattern.permute.xlu0 3
        %439 = vperm.xlu0 %438, %v408
        %v440 = vpop.permute.xlu0 %439
        %v442 = vmul.f32 %v435, %v440
        %v443 = vmul.f32 %v436, %v440
        %v444 = vmul.f32 %v437, %v440
        %v445 = vld [vmem:[#allocation4] sm:$0xff]
        %v446 = vld [vmem:[#allocation4 + $0x8] sm:$0xff]
        %v447 = vld [vmem:[#allocation4 + $0x10] sm:$0xff]
        %448 = vset.pattern.permute.xlu0 5
        %449 = vperm.xlu0 %448, %v408
        %v450 = vpop.permute.xlu0 %449
        %v452 = vmul.f32 %v445, %v450
        %v453 = vmul.f32 %v446, %v450
        %v454 = vmul.f32 %v447, %v450
        %455 = vset.pattern.permute.xlu0 6
        %456 = vperm.xlu0 %455, %v408
        %v457 = vpop.permute.xlu0 %456
        %v459 = vmul.f32 %v435, %v457
        %v460 = vmul.f32 %v436, %v457
        %v461 = vmul.f32 %v437, %v457
        %v462 = vld [vmem:[#allocation3] sm:$0xff]
        %v463 = vld [vmem:[#allocation3 + $0x8] sm:$0xff]
        %v464 = vld [vmem:[#allocation3 + $0x10] sm:$0xff]
        %465 = vset.pattern.permute.xlu0 7
        %466 = vperm.xlu0 %465, %v408
        %v467 = vpop.permute.xlu0 %466
        %v469 = vmul.f32 %v462, %v467
        %v470 = vmul.f32 %v463, %v467
        %v471 = vmul.f32 %v464, %v467
        %472 = vset.pattern.permute.xlu0 8
        %473 = vperm.xlu0 %472, %v408
        %v474 = vpop.permute.xlu0 %473
        %v476 = vmul.f32 %v445, %v474
        %v477 = vmul.f32 %v446, %v474
        %v478 = vmul.f32 %v447, %v474
        %479 = vset.pattern.permute.xlu0 4
        %480 = vperm.xlu0 %479, %v408
        %v481 = vpop.permute.xlu0 %480
        %v483 = vmul.f32 %v323, %v481
        %v484 = vmul.f32 %v324, %v481
        %486 = vset.pattern.permute.xlu0 0
        %487 = vperm.xlu0 %486, %v409
        %v488 = vpop.permute.xlu0 %487
        %v490 = vadd.f32 %v483, %v488
        %v491 = vadd.f32 %v484, %v488
        %v492 = vadd.f32 %v417, %v425
        %v493 = vadd.f32 %v418, %v426
        %497 = vrot.lane.b32.xlu0 %v442, 112
        %v498 = vpop.permute.xlu0 %497
        %499 = vrot.lane.b32.xlu0 %v443, 112
        %v500 = vpop.permute.xlu0 %499
        %501 = vrot.lane.b32.xlu0 %v444, 112
        %v502 = vpop.permute.xlu0 %501
        %vm503 = vcmask 916480
        %v504 = vsel %vm503, %v498, %v500
        %v505 = vsel %vm503, %v500, %v502
        %v508 = vadd.f32 %v433, %v504
        %v509 = vadd.f32 %v434, %v505
        %513 = vrot.lane.b32.xlu0 %v459, 112
        %v514 = vpop.permute.xlu0 %513
        %515 = vrot.lane.b32.xlu0 %v460, 112
        %v516 = vpop.permute.xlu0 %515
        %517 = vrot.lane.b32.xlu0 %v461, 112
        %v518 = vpop.permute.xlu0 %517
        %v519 = vsel %vm503, %v514, %v516
        %v520 = vsel %vm503, %v516, %v518
        %v524 = vadd.f32 %v452, %v519
        %v525 = vadd.f32 %v453, %v520
        %v526 = vadd.f32 %v454, %v518
        %v527 = vadd.f32 %v469, %v476
        %v528 = vadd.f32 %v470, %v477
        %v529 = vadd.f32 %v471, %v478
        %v530 = vadd.f32 %v492, %v508
        %v531 = vadd.f32 %v493, %v509
        %535 = vrot.lane.b32.xlu0 %v527, 112
        %v536 = vpop.permute.xlu0 %535
        %537 = vrot.lane.b32.xlu0 %v528, 112
        %v538 = vpop.permute.xlu0 %537
        %539 = vrot.lane.b32.xlu0 %v529, 112
        %v540 = vpop.permute.xlu0 %539
        %v541 = vsel %vm503, %v536, %v538
        %v542 = vsel %vm503, %v538, %v540
        %v546 = vadd.f32 %v524, %v541
        %v547 = vadd.f32 %v525, %v542
        %v548 = vadd.f32 %v526, %v540
        %552 = vrot.lane.b32.xlu0 %v546, 112
        %v553 = vpop.permute.xlu0 %552
        %554 = vrot.lane.b32.xlu0 %v547, 112
        %v555 = vpop.permute.xlu0 %554
        %556 = vrot.lane.b32.xlu0 %v548, 112
        %v557 = vpop.permute.xlu0 %556
        %v558 = vsel %vm503, %v553, %v555
        %v559 = vsel %vm503, %v555, %v557
        %v562 = vadd.f32 %v530, %v558
        %v563 = vadd.f32 %v531, %v559
        %v564 = vadd.f32 %v490, %v562
        %v565 = vadd.f32 %v491, %v563
        %566 = vst [vmem:[%s252] sm:$0xff] %v564
        %567 = vst [vmem:[%s252 + $0x8] sm:$0xff] %v565
        %s568 = sand.u32 %s145, 1
        %s569 = scalar_lea.sflag [#allocation7], %s568
        %s570 = sand.u32 %s145, 1
        %s571 = smul.addr %s570, 16
        %s572 = scalar_lea.vmem [#allocation8], %s571
        // Predicated region
        $region41: #{tpu_custom_call.1} parent=35 // pred_check
          %p573 = pneg %p155
        $region42: #{tpu_custom_call.1} parent=35 // pred_check_branch
          %575 = sbr.rel (%p573) target = $region44
        $region43: #{tpu_custom_call.1} parent=35 // pred_region
          %577 = vsyncadd %s569, 0
          %s578 = smul.addr %s24, 2
          %s579 = smul.addr %s23, 2
          %s580 = sadd.s32 %s578, %s579
          %s581 = smul.addr %s580, 8
          %s582 = scalar_lea.hbm %s4, %s581
          %s584 = sshll.u32 %s572, 4
          %s585 = int_to_ptr.vmem [resolvable:$true] %s584
          %s586 = sshll.u32 %s582, 4
          %s587 = int_to_ptr.hbm [resolvable:$true] %s586
          %589 = dma.vmem_to_hbm [thread:$0]  %s585, 256, %s587, %s569
        $region44: #{tpu_custom_call.1} parent=35 // pred_fallthru
          _
      $region36: #{tpu_custom_call.1} parent=5 // pred_fallthru
        _
      %p590 = scmp.le.s32.totalorder 2, %s14
      // Predicated region
      $region45: #{tpu_custom_call.1} parent=5 // pred_check
        %p591 = pneg %p590
      $region46: #{tpu_custom_call.1} parent=5 // pred_check_branch
        %593 = sbr.rel (%p591) target = $region48
      $region47: #{tpu_custom_call.1} parent=5 // pred_region
        %s594 = ssub.s32 %s14, 2
        // Predicated region
        $region49: #{tpu_custom_call.1} parent=47 // pred_check
          %p595 = pneg %p161
        $region50: #{tpu_custom_call.1} parent=47 // pred_check_branch
          %597 = sbr.rel (%p595) target = $region52
        $region51: #{tpu_custom_call.1} parent=47 // pred_region
          %s598 = sand.u32 %s146, 1
          %s599 = scalar_lea.sflag [#allocation7], %s598
          %s600 = sand.u32 %s146, 1
          %s601 = smul.addr %s600, 16
          %s602 = scalar_lea.vmem [#allocation8], %s601
          %604 = dma.done %s599, 256
        $region52: #{tpu_custom_call.1} parent=47 // pred_fallthru
          _
      $region48: #{tpu_custom_call.1} parent=5 // pred_fallthru
        _
    $region6: #{tpu_custom_call.1} parent=1 // loop_footer
      %s18 = sadd.s32 1, %s14
    $region7: #{tpu_custom_call.1} parent=1 // loop_footer_branch
      %13 = sbr.rel target = $region3
    $region8: #{tpu_custom_call.1} parent=1 // loop_exit
      _
    %605 = vsyncpa [#allocation6], 1
    %s606 = scalar_lea.sflag [#allocation6], 1
    %607 = vsyncpa %s606, 1
    %608 = vsyncpa [#allocation7], 1
    %s609 = scalar_lea.sflag [#allocation7], 1
    %610 = vsyncpa %s609, 1

</llo_original>
